<compile_context>
chip_gen: v7x
topology: tpu7x:2x2x1
jax: 0.10.0
libtpu: 0.0.40
codegen_flags: <defaults>
</compile_context>

<pallas_src>
import jax
import jax.numpy as jnp
from jax.experimental import pallas as pl
from jax.experimental.pallas import tpu as pltpu


def _round_up(x, m):
    return ((x + m - 1) // m) * m


_NEG = jnp.float32(-1e30)  # padding value for softmax'd logits


# ----------------------------------------------------------------------------
# Fused kernel: multimodal classification head + DETR box selection
# ----------------------------------------------------------------------------
def vqa_fused_kernel(target_ref,                       # SMEM (1,1) int32
                     x_ref, w1_ref, b1_ref, w2_ref, b2_ref,   # fusion head
                     dlogits_ref, boxes_ref,                  # DETR post-proc
                     ans_ref, slab_ref, probs_ref):           # outputs
    # ---- 1) fusion / classification head -----------------------------------
    #   h      = concat(text,image) @ W1 + b1
    #   logits = h @ W2 + b2
    h = (jnp.dot(x_ref[...], w1_ref[...], preferred_element_type=jnp.float32)
         + b1_ref[...])
    ans_ref[...] = (jnp.dot(h.astype(jnp.bfloat16), w2_ref[...],
                            preferred_element_type=jnp.float32)
                    + b2_ref[...])

    # ---- 2) DETR post-processing --------------------------------------------
    logits = dlogits_ref[...]                                  # (Qp, Cp) f32
    Qp, Cp = logits.shape

    # numerically-stable softmax; denominator via EUP approximate reciprocal
    m = jnp.max(logits, axis=-1, keepdims=True)                # (Qp, 1)
    e = jnp.exp(logits - m)
    probs = e * pl.reciprocal(jnp.sum(e, axis=-1, keepdims=True), approx=True)
    probs_ref[...] = probs

    # argmax on the raw logits (== argmax of softmax, robust to approx recip);
    # first index achieving the row max == torch argmax semantics
    col = jax.lax.broadcasted_iota(jnp.int32, (Qp, Cp), 1)
    argmax_idx = jnp.min(jnp.where(logits == m, col, Cp),
                         axis=-1, keepdims=True)               # (Qp, 1) int32
    maxp = jnp.max(probs, axis=-1, keepdims=True)              # prob at argmax

    target = target_ref[0, 0]                                  # SMEM scalar
    keep = jnp.logical_and(argmax_idx == target, maxp > 0.5)   # (Qp, 1) bool
    keepf = keep.astype(jnp.float32)

    # lane-dense output slab: cols 0:4 = masked boxes, col 4 = keep mask
    slab = boxes_ref[...] * keepf                              # (Qp, 128)
    lane = jax.lax.broadcasted_iota(jnp.int32, slab.shape, 1)
    slab_ref[...] = jnp.where(lane == 4, keepf, slab)


# ----------------------------------------------------------------------------
# Wrapper: padding / packing glue + pallas_call
# ----------------------------------------------------------------------------
def vqa_heads(text_feat, image_feat, w1, b1, w2, b2,
              detr_logits, pred_boxes, target_label):
    """Returns (answer_logits [B,A], keep_mask [Q,1], masked_boxes [Q,4],
    probs [Q,C])."""
    B, Dt = text_feat.shape
    _, Di = image_feat.shape
    D = Dt + Di
    H = w1.shape[1]
    A = w2.shape[1]
    Q, C = detr_logits.shape

    # Pad everything to lane-dense / sublane-aligned shapes.
    Bp = _round_up(B, 8)
    Dp = _round_up(D, 128)
    Hp = _round_up(H, 128)
    Ap = _round_up(A, 128)
    Qp = _round_up(Q, 8)
    Cp = _round_up(C, 128)

    # Concatenate the two modalities once (tiny copy) -> single long-K matmul.
    x = jnp.concatenate([text_feat, image_feat], axis=-1)
    x = jnp.pad(x, ((0, Bp - B), (0, Dp - D))).astype(jnp.bfloat16)
    w1p = jnp.pad(w1, ((0, Dp - D), (0, Hp - H))).astype(jnp.bfloat16)
    b1p = jnp.pad(b1, (0, Hp - H)).reshape(1, Hp).astype(jnp.float32)
    w2p = jnp.pad(w2, ((0, Hp - H), (0, Ap - A))).astype(jnp.bfloat16)
    b2p = jnp.pad(b2, (0, Ap - A)).reshape(1, Ap).astype(jnp.float32)

    # DETR logits padded with a very negative value so softmax/argmax ignore
    # the padding; boxes packed into a lane-dense (Qp, 128) slab.
    dlog = jnp.full((Qp, Cp), _NEG, jnp.float32)
    dlog = dlog.at[:Q, :C].set(detr_logits.astype(jnp.float32))
    boxes = jnp.zeros((Qp, 128), jnp.float32)
    boxes = boxes.at[:Q, :4].set(pred_boxes.astype(jnp.float32))

    target = jnp.asarray(target_label, jnp.int32).reshape(1, 1)

    vmem = pl.BlockSpec(memory_space=pltpu.MemorySpace.VMEM)
    smem = pl.BlockSpec(memory_space=pltpu.MemorySpace.SMEM)

    ans_p, slab, probs_p = pl.pallas_call(
        vqa_fused_kernel,
        out_shape=(jax.ShapeDtypeStruct((Bp, Ap), jnp.float32),
                   jax.ShapeDtypeStruct((Qp, 128), jnp.float32),
                   jax.ShapeDtypeStruct((Qp, Cp), jnp.float32)),
        in_specs=[smem, vmem, vmem, vmem, vmem, vmem, vmem, vmem],
        out_specs=(vmem, vmem, vmem),
        compiler_params=pltpu.CompilerParams(
            vmem_limit_bytes=64 * 1024 * 1024),
    )(target, x, w1p, b1p, w2p, b2p, dlog, boxes)

    # Un-pad / un-pack (plain JAX glue).
    answer_logits = ans_p[:B, :A]
    masked_boxes = slab[:Q, :4]
    keep_mask = slab[:Q, 4:5]
    probs = probs_p[:Q, :C]
    return answer_logits, keep_mask, masked_boxes, probs


# ----------------------------------------------------------------------------
# Driver
# ----------------------------------------------------------------------------
if __name__ == "__main__":
    key = jax.random.PRNGKey(0)
    k = jax.random.split(key, 8)

    # Small synthetic shapes consistent with the module (module implies:
    # text 768, image 2048, hidden 512, DETR 100 queries x 92 classes —
    # scaled down here).
    B = 2            # batch
    Dt = 32          # text encoder hidden size (BERT: 768)
    Di = 64          # image encoder out dim    (ResNet50: 2048)
    H = 128          # multi_modal_combine out  (module: 512)
    A = 16           # num_answers
    Q = 8            # DETR object queries      (DETR: 100)
    C = 16           # DETR classes + no-object (DETR: 92)
    target_label = 3

    # Deterministic synthetic parameters.
    w1 = jax.random.normal(k[0], (Dt + Di, H), jnp.float32) * 0.05
    b1 = jax.random.normal(k[1], (H,), jnp.float32) * 0.01
    w2 = jax.random.normal(k[2], (H, A), jnp.float32) * 0.05
    b2 = jax.random.normal(k[3], (A,), jnp.float32) * 0.01

    # Synthetic encoder outputs and DETR head outputs (backbones not
    # reproduced — see TODO at top of file).
    text_feat = jax.random.normal(k[4], (B, Dt), jnp.float32)
    image_feat = jax.random.normal(k[5], (B, Di), jnp.float32)
    detr_logits = jax.random.normal(k[6], (Q, C), jnp.float32) * 3.0
    pred_boxes = jax.random.uniform(k[7], (Q, 4), jnp.float32)

    answer_logits, keep_mask, masked_boxes, probs = vqa_heads(
        text_feat, image_feat, w1, b1, w2, b2,
        detr_logits, pred_boxes, target_label)
    answer_logits = jax.block_until_ready(answer_logits)
    keep_mask = jax.block_until_ready(keep_mask)
    masked_boxes = jax.block_until_ready(masked_boxes)
    probs = jax.block_until_ready(probs)

    answer_idx = jnp.argmax(answer_logits, axis=-1)  # glue: picks the "answer"

    # ---- reference checks (plain JAX) ---------------------------------------
    # Fusion head reference using the same bf16-rounded operands (kernel runs
    # bf16 matmuls with f32 accumulation).
    xb = jnp.concatenate([text_feat, image_feat], axis=-1).astype(jnp.bfloat16)
    ref_h = (xb.astype(jnp.float32) @ w1.astype(jnp.bfloat16).astype(jnp.float32)
             + b1)
    ref_logits = (ref_h.astype(jnp.bfloat16).astype(jnp.float32)
                  @ w2.astype(jnp.bfloat16).astype(jnp.float32) + b2)
    assert jnp.allclose(answer_logits, ref_logits, atol=5e-3), "fusion mismatch"

    ref_probs = jax.nn.softmax(detr_logits, axis=-1)
    ref_arg = jnp.argmax(detr_logits, axis=-1)
    ref_keep = ((ref_arg == target_label)
                & (ref_probs[jnp.arange(Q), ref_arg] > 0.5)).astype(jnp.float32)
    assert jnp.allclose(keep_mask[:, 0], ref_keep), "detr mask mismatch"
    assert jnp.allclose(masked_boxes, pred_boxes * ref_keep[:, None],
                        atol=1e-5), "box mismatch"
    assert jnp.allclose(probs, ref_probs, atol=5e-3), "softmax mismatch"

    _ = answer_idx
    # TODO(synk): string-level answer mapping & quoted-phrase regex — no
    # Pallas equivalent (masked_boxes is a zero-masked fixed-shape tensor, not
    # torch's variable-length filtered list).

    print("KERNEL_OK")
</pallas_src>

<mosaic_0001>
module attributes {stable_mosaic.version = 11 : i64} {
  func.func @vqa_fused_kernel(%arg0: memref<1x1xi32, #tpu.memory_space<smem>>, %arg1: memref<8x128xbf16, #tpu.memory_space<vmem>>, %arg2: memref<128x128xbf16, #tpu.memory_space<vmem>>, %arg3: memref<1x128xf32, #tpu.memory_space<vmem>>, %arg4: memref<128x128xbf16, #tpu.memory_space<vmem>>, %arg5: memref<1x128xf32, #tpu.memory_space<vmem>>, %arg6: memref<8x128xf32, #tpu.memory_space<vmem>>, %arg7: memref<8x128xf32, #tpu.memory_space<vmem>>, %arg8: memref<8x128xf32, #tpu.memory_space<vmem>>, %arg9: memref<8x128xf32, #tpu.memory_space<vmem>>, %arg10: memref<8x128xf32, #tpu.memory_space<vmem>>) attributes {dimension_semantics = [], scalar_prefetch = 0 : i64, scratch_operands = 0 : i64, tpu.core_type = #tpu.core_type<tc>} {
    %c0 = arith.constant 0 : index
    %c0_0 = arith.constant 0 : index
    %0 = vector.load %arg1[%c0, %c0_0] : memref<8x128xbf16, #tpu.memory_space<vmem>>, vector<8x128xbf16>
    %c0_1 = arith.constant 0 : index
    %c0_2 = arith.constant 0 : index
    %1 = vector.load %arg2[%c0_1, %c0_2] : memref<128x128xbf16, #tpu.memory_space<vmem>>, vector<128x128xbf16>
    %cst = arith.constant dense<0.000000e+00> : vector<8x128xf32>
    %2 = tpu.matmul %0, %1, %cst {dimension_numbers = #tpu.dot_dimension_numbers<[1], [0], [0], [1], [0, 0, 1, 1], [], []>} : vector<8x128xbf16>, vector<128x128xbf16>, vector<8x128xf32> -> vector<8x128xf32>
    %c0_3 = arith.constant 0 : index
    %c0_4 = arith.constant 0 : index
    %3 = vector.load %arg3[%c0_3, %c0_4] : memref<1x128xf32, #tpu.memory_space<vmem>>, vector<1x128xf32>
    %4 = vector.broadcast %3 : vector<1x128xf32> to vector<8x128xf32>
    %5 = arith.addf %2, %4 : vector<8x128xf32>
    %6 = arith.truncf %5 : vector<8x128xf32> to vector<8x128xbf16>
    %c0_5 = arith.constant 0 : index
    %c0_6 = arith.constant 0 : index
    %7 = vector.load %arg4[%c0_5, %c0_6] : memref<128x128xbf16, #tpu.memory_space<vmem>>, vector<128x128xbf16>
    %cst_7 = arith.constant dense<0.000000e+00> : vector<8x128xf32>
    %8 = tpu.matmul %6, %7, %cst_7 {dimension_numbers = #tpu.dot_dimension_numbers<[1], [0], [0], [1], [0, 0, 1, 1], [], []>} : vector<8x128xbf16>, vector<128x128xbf16>, vector<8x128xf32> -> vector<8x128xf32>
    %c0_8 = arith.constant 0 : index
    %c0_9 = arith.constant 0 : index
    %9 = vector.load %arg5[%c0_8, %c0_9] : memref<1x128xf32, #tpu.memory_space<vmem>>, vector<1x128xf32>
    %10 = vector.broadcast %9 : vector<1x128xf32> to vector<8x128xf32>
    %11 = arith.addf %8, %10 : vector<8x128xf32>
    %c0_10 = arith.constant 0 : index
    %c0_11 = arith.constant 0 : index
    %12 = vector.load %arg8[%c0_10, %c0_11] : memref<8x128xf32, #tpu.memory_space<vmem>>, vector<8x128xf32>
    tpu.vector_store %arg8[%c0_10, %c0_11], %11 {strides = array<i32>} : memref<8x128xf32, #tpu.memory_space<vmem>>, vector<8x128xf32>,
    %c0_12 = arith.constant 0 : index
    %c0_13 = arith.constant 0 : index
    %13 = vector.load %arg6[%c0_12, %c0_13] : memref<8x128xf32, #tpu.memory_space<vmem>>, vector<8x128xf32>
    %cst_14 = arith.constant dense<0xFF800000> : vector<8xf32>
    %14 = vector.multi_reduction <maximumf>, %13, %cst_14 [1] : vector<8x128xf32> to vector<8xf32>
    %15 = vector.shape_cast %14 : vector<8xf32> to vector<8x1xf32>
    %16 = vector.broadcast %15 : vector<8x1xf32> to vector<8x128xf32>
    %17 = arith.subf %13, %16 : vector<8x128xf32>
    %18 = math.exp %17 : vector<8x128xf32>
    %cst_15 = arith.constant dense<0.000000e+00> : vector<8xf32>
    %19 = vector.multi_reduction <add>, %18, %cst_15 [1] : vector<8x128xf32> to vector<8xf32>
    %20 = vector.shape_cast %19 : vector<8xf32> to vector<8x1xf32>
    %21 = tpu.reciprocal %20 {approx = true} : vector<8x1xf32> -> vector<8x1xf32>
    %22 = vector.broadcast %21 : vector<8x1xf32> to vector<8x128xf32>
    %23 = arith.mulf %18, %22 : vector<8x128xf32>
    %c0_16 = arith.constant 0 : index
    %c0_17 = arith.constant 0 : index
    %24 = vector.load %arg10[%c0_16, %c0_17] : memref<8x128xf32, #tpu.memory_space<vmem>>, vector<8x128xf32>
    tpu.vector_store %arg10[%c0_16, %c0_17], %23 {strides = array<i32>} : memref<8x128xf32, #tpu.memory_space<vmem>>, vector<8x128xf32>,
    %25 = tpu.iota {dimensions = array<i32: 1>} : vector<8x128xi32>
    %26 = vector.broadcast %15 : vector<8x1xf32> to vector<8x128xf32>
    %27 = arith.cmpf oeq, %13, %26 : vector<8x128xf32>
    %c128_i32 = arith.constant 128 : i32
    %28 = vector.broadcast %c128_i32 : i32 to vector<8x128xi32>
    %29 = arith.select %27, %25, %28 : vector<8x128xi1>, vector<8x128xi32>
    %cst_18 = arith.constant dense<2147483647> : vector<8xi32>
    %30 = vector.multi_reduction <minsi>, %29, %cst_18 [1] : vector<8x128xi32> to vector<8xi32>
    %31 = vector.shape_cast %30 : vector<8xi32> to vector<8x1xi32>
    %cst_19 = arith.constant dense<0xFF800000> : vector<8xf32>
    %32 = vector.multi_reduction <maximumf>, %23, %cst_19 [1] : vector<8x128xf32> to vector<8xf32>
    %33 = vector.shape_cast %32 : vector<8xf32> to vector<8x1xf32>
    %c0_20 = arith.constant 0 : index
    %c0_21 = arith.constant 0 : index
    %34 = memref.load %arg0[%c0_20, %c0_21] : memref<1x1xi32, #tpu.memory_space<smem>>
    %35 = vector.broadcast %34 : i32 to vector<8x1xi32>
    %36 = arith.cmpi eq, %31, %35 : vector<8x1xi32>
    %cst_22 = arith.constant 5.000000e-01 : f32
    %37 = vector.broadcast %cst_22 : f32 to vector<8x1xf32>
    %38 = arith.cmpf ogt, %33, %37 : vector<8x1xf32>
    %39 = arith.andi %36, %38 : vector<8x1xi1>
    %40 = arith.extui %39 : vector<8x1xi1> to vector<8x1xi32>
    %41 = arith.sitofp %40 : vector<8x1xi32> to vector<8x1xf32>
    %c0_23 = arith.constant 0 : index
    %c0_24 = arith.constant 0 : index
    %42 = vector.load %arg7[%c0_23, %c0_24] : memref<8x128xf32, #tpu.memory_space<vmem>>, vector<8x128xf32>
    %43 = vector.broadcast %41 : vector<8x1xf32> to vector<8x128xf32>
    %44 = arith.mulf %42, %43 : vector<8x128xf32>
    %45 = tpu.iota {dimensions = array<i32: 1>} : vector<8x128xi32>
    %c4_i32 = arith.constant 4 : i32
    %46 = vector.broadcast %c4_i32 : i32 to vector<8x128xi32>
    %47 = arith.cmpi eq, %45, %46 : vector<8x128xi32>
    %48 = vector.shape_cast %41 : vector<8x1xf32> to vector<8x1xf32>
    %49 = vector.broadcast %48 : vector<8x1xf32> to vector<8x128xf32>
    %50 = arith.select %47, %49, %44 : vector<8x128xi1>, vector<8x128xf32>
    %c0_25 = arith.constant 0 : index
    %c0_26 = arith.constant 0 : index
    %51 = vector.load %arg9[%c0_25, %c0_26] : memref<8x128xf32, #tpu.memory_space<vmem>>, vector<8x128xf32>
    tpu.vector_store %arg9[%c0_25, %c0_26], %50 {strides = array<i32>} : memref<8x128xf32, #tpu.memory_space<vmem>>, vector<8x128xf32>,
    return
  }
}

</mosaic_0001>

<llo_original>
// kernel: tpu_custom_call.1
$region0: #{tpu_custom_call.1}
  #allocation0 [shape = 'u32[]', space=smem, size = 0x4, offset = 0x4, fixed_abs, tag = 'smem constant byte address 0x4 - core index']
  #allocation1 [shape = 'u32[144,128]{1,0:T(1,128)}', space=vmem, size = 0x12000, scoped, tag = 'internal scratch']
  #allocation2 [shape = 's32[1,1]{1,0:T(1,128)S(6)}', space=smem, size = 0x200, scoped, tag = 'scoped memory for tpu_custom_call.1']
  %s0 = inlined_call_operand.<no memory space> [shape: s32[1,1], index: 0, kind: input, shape index: {}]
  %s1 = inlined_call_operand.hbm [shape: bf16[8,128], index: 1, kind: input, shape index: {}]
  %s2 = inlined_call_operand.hbm [shape: bf16[128,128], index: 2, kind: input, shape index: {}]
  %s3 = inlined_call_operand.hbm [shape: f32[1,128], index: 3, kind: input, shape index: {}]
  %s4 = inlined_call_operand.hbm [shape: bf16[128,128], index: 4, kind: input, shape index: {}]
  %s5 = inlined_call_operand.hbm [shape: f32[1,128], index: 5, kind: input, shape index: {}]
  %s6 = inlined_call_operand.hbm [shape: f32[8,128], index: 6, kind: input, shape index: {}]
  %s7 = inlined_call_operand.hbm [shape: f32[8,128], index: 7, kind: input, shape index: {}]
  %s8 = inlined_call_operand.hbm [shape: f32[8,128], index: 8, kind: output, shape index: {0}]
  %s9 = inlined_call_operand.hbm [shape: f32[8,128], index: 9, kind: output, shape index: {1}]
  %s10 = inlined_call_operand.hbm [shape: f32[8,128], index: 10, kind: output, shape index: {2}]
  %11 = xla_tuple %s8, %s9, %s10
  %s12 = sld [smem:[#allocation0]]
  $region86: #{tpu_custom_call.1} parent=0
    _
  %s14 = ssub.s32 1, %s12
  %s15 = scalar_select 0, %s14, %s12
  %16 = sst [smem:[#allocation2]] %s0
  $region1: #{tpu_custom_call.1} parent=0
    #allocation3 [shape = 'u8[2048]{0}', space=vmem, size = 0x800, scoped, tag = 'input window, operand 1, single buffered']
    #allocation4 [shape = 's32[1]{0}', space=sflag, size = 0x4, scoped, tag = 'scoped memory for tpu_custom_call.1']
    #allocation5 [shape = 's32[1]{0}', space=sflag, size = 0x4, scoped, tag = 'scoped memory for tpu_custom_call.1']
    #allocation6 [shape = 'u8[32768]{0}', space=vmem, size = 0x8000, scoped, tag = 'input window, operand 2, single buffered']
    #allocation7 [shape = 's32[1]{0}', space=sflag, size = 0x4, scoped, tag = 'scoped memory for tpu_custom_call.1']
    #allocation8 [shape = 'u8[512]{0}', space=vmem, size = 0x400, scoped, tag = 'input window, operand 3, single buffered']
    #allocation9 [shape = 'u8[32768]{0}', space=vmem, size = 0x8000, scoped, tag = 'input window, operand 4, single buffered']
    #allocation10 [shape = 's32[1]{0}', space=sflag, size = 0x4, scoped, tag = 'scoped memory for tpu_custom_call.1']
    #allocation11 [shape = 'u8[512]{0}', space=vmem, size = 0x400, scoped, tag = 'input window, operand 5, single buffered']
    #allocation12 [shape = 'u8[4096]{0}', space=vmem, size = 0x1000, scoped, tag = 'input window, operand 6, single buffered']
    #allocation13 [shape = 's32[1]{0}', space=sflag, size = 0x4, scoped, tag = 'scoped memory for tpu_custom_call.1']
    #allocation14 [shape = 'u8[4096]{0}', space=vmem, size = 0x1000, scoped, tag = 'input window, operand 7, single buffered']
    #allocation15 [shape = 'u8[4096]{0}', space=vmem, size = 0x1000, scoped, tag = 'output window, operand 0, single buffered']
    #allocation16 [shape = 'u8[4096]{0}', space=vmem, size = 0x1000, scoped, tag = 'output window, operand 1, single buffered']
    #allocation17 [shape = 's32[1]{0}', space=sflag, size = 0x4, scoped, tag = 'scoped memory for tpu_custom_call.1']
    #allocation18 [shape = 'u8[4096]{0}', space=vmem, size = 0x1000, scoped, tag = 'output window, operand 2, single buffered']
    %17 = vsyncpa [#allocation4], 0
    %18 = vsyncpa [#allocation7], 0
    %19 = vsyncpa [#allocation10], 0
    %20 = vsyncpa [#allocation13], 0
    %21 = vsyncpa [#allocation5], 0
    %22 = vsyncpa [#allocation17], 0
    // Predicated region
    $region2: #{tpu_custom_call.1} parent=1 // pred_check
      _
    $region3: #{tpu_custom_call.1} parent=1 // pred_check_branch
      %24 = sbr.rel (0) target = $region5
    $region4: #{tpu_custom_call.1} parent=1 // pred_region
      _
    $region5: #{tpu_custom_call.1} parent=1 // pred_fallthru
      _
    // Predicated region
    $region6: #{tpu_custom_call.1} parent=1 // pred_check
      _
    $region7: #{tpu_custom_call.1} parent=1 // pred_check_branch
      %26 = sbr.rel (0) target = $region9
    $region8: #{tpu_custom_call.1} parent=1 // pred_region
      %s28 = ssub.s32 64, 64
      %29 = vsyncadd [#allocation4], %s28
      %s31 = sshll.u32 [#allocation3], 4
      %s32 = int_to_ptr.vmem [resolvable:$true] %s31
      %34 = dma.hbm_to_vmem [thread:$0]  %s1, 64, %s32, [#allocation4]
    $region9: #{tpu_custom_call.1} parent=1 // pred_fallthru
      _
    // Predicated region
    $region10: #{tpu_custom_call.1} parent=1 // pred_check
      _
    $region11: #{tpu_custom_call.1} parent=1 // pred_check_branch
      %36 = sbr.rel (0) target = $region13
    $region12: #{tpu_custom_call.1} parent=1 // pred_region
      %s38 = ssub.s32 1024, 1024
      %39 = vsyncadd [#allocation7], %s38
      %s40 = sshll.u32 [#allocation6], 4
      %s41 = int_to_ptr.vmem [resolvable:$true] %s40
      %46 = dma.hbm_to_vmem [thread:$0]  %s2, 1024, %s41, [#allocation7], 64, 64, 4
    $region13: #{tpu_custom_call.1} parent=1 // pred_fallthru
      _
    // Predicated region
    $region14: #{tpu_custom_call.1} parent=1 // pred_check
      _
    $region15: #{tpu_custom_call.1} parent=1 // pred_check_branch
      %48 = sbr.rel (0) target = $region17
    $region16: #{tpu_custom_call.1} parent=1 // pred_region
      %s50 = ssub.s32 16, 16
      %51 = vsyncadd [#allocation7], %s50
      %s53 = sshll.u32 [#allocation8], 4
      %s54 = int_to_ptr.vmem [resolvable:$true] %s53
      %56 = dma.hbm_to_vmem [thread:$0]  %s3, 16, %s54, [#allocation7]
    $region17: #{tpu_custom_call.1} parent=1 // pred_fallthru
      _
    // Predicated region
    $region18: #{tpu_custom_call.1} parent=1 // pred_check
      _
    $region19: #{tpu_custom_call.1} parent=1 // pred_check_branch
      %58 = sbr.rel (0) target = $region21
    $region20: #{tpu_custom_call.1} parent=1 // pred_region
      %s60 = ssub.s32 1024, 1024
      %61 = vsyncadd [#allocation10], %s60
      %s62 = sshll.u32 [#allocation9], 4
      %s63 = int_to_ptr.vmem [resolvable:$true] %s62
      %68 = dma.hbm_to_vmem [thread:$0]  %s4, 1024, %s63, [#allocation10], 64, 64, 4
    $region21: #{tpu_custom_call.1} parent=1 // pred_fallthru
      _
    // Predicated region
    $region22: #{tpu_custom_call.1} parent=1 // pred_check
      _
    $region23: #{tpu_custom_call.1} parent=1 // pred_check_branch
      %70 = sbr.rel (0) target = $region25
    $region24: #{tpu_custom_call.1} parent=1 // pred_region
      %s72 = ssub.s32 16, 16
      %73 = vsyncadd [#allocation10], %s72
      %s75 = sshll.u32 [#allocation11], 4
      %s76 = int_to_ptr.vmem [resolvable:$true] %s75
      %78 = dma.hbm_to_vmem [thread:$0]  %s5, 16, %s76, [#allocation10]
    $region25: #{tpu_custom_call.1} parent=1 // pred_fallthru
      _
    // Predicated region
    $region26: #{tpu_custom_call.1} parent=1 // pred_check
      _
    $region27: #{tpu_custom_call.1} parent=1 // pred_check_branch
      %80 = sbr.rel (0) target = $region29
    $region28: #{tpu_custom_call.1} parent=1 // pred_region
      %s82 = ssub.s32 128, 128
      %83 = vsyncadd [#allocation13], %s82
      %s85 = sshll.u32 [#allocation12], 4
      %s86 = int_to_ptr.vmem [resolvable:$true] %s85
      %88 = dma.hbm_to_vmem [thread:$0]  %s6, 128, %s86, [#allocation13]
    $region29: #{tpu_custom_call.1} parent=1 // pred_fallthru
      _
    // Predicated region
    $region30: #{tpu_custom_call.1} parent=1 // pred_check
      _
    $region31: #{tpu_custom_call.1} parent=1 // pred_check_branch
      %90 = sbr.rel (0) target = $region33
    $region32: #{tpu_custom_call.1} parent=1 // pred_region
      %s92 = ssub.s32 128, 128
      %93 = vsyncadd [#allocation13], %s92
      %s95 = sshll.u32 [#allocation14], 4
      %s96 = int_to_ptr.vmem [resolvable:$true] %s95
      %98 = dma.hbm_to_vmem [thread:$0]  %s7, 128, %s96, [#allocation13]
    $region33: #{tpu_custom_call.1} parent=1 // pred_fallthru
      _
    // Predicated region
    $region34: #{tpu_custom_call.1} parent=1 // pred_check
      _
    $region35: #{tpu_custom_call.1} parent=1 // pred_check_branch
      %100 = sbr.rel (0) target = $region37
    $region36: #{tpu_custom_call.1} parent=1 // pred_region
      %101 = dma.done [#allocation4], 64
    $region37: #{tpu_custom_call.1} parent=1 // pred_fallthru
      _
    // Predicated region
    $region38: #{tpu_custom_call.1} parent=1 // pred_check
      _
    $region39: #{tpu_custom_call.1} parent=1 // pred_check_branch
      %103 = sbr.rel (0) target = $region41
    $region40: #{tpu_custom_call.1} parent=1 // pred_region
      %104 = dma.done [#allocation7], 1024
    $region41: #{tpu_custom_call.1} parent=1 // pred_fallthru
      _
    // Predicated region
    $region42: #{tpu_custom_call.1} parent=1 // pred_check
      _
    $region43: #{tpu_custom_call.1} parent=1 // pred_check_branch
      %106 = sbr.rel (0) target = $region45
    $region44: #{tpu_custom_call.1} parent=1 // pred_region
      %107 = dma.done [#allocation7], 16
    $region45: #{tpu_custom_call.1} parent=1 // pred_fallthru
      _
    // Predicated region
    $region46: #{tpu_custom_call.1} parent=1 // pred_check
      _
    $region47: #{tpu_custom_call.1} parent=1 // pred_check_branch
      %109 = sbr.rel (0) target = $region49
    $region48: #{tpu_custom_call.1} parent=1 // pred_region
      %110 = dma.done [#allocation10], 1024
    $region49: #{tpu_custom_call.1} parent=1 // pred_fallthru
      _
    // Predicated region
    $region50: #{tpu_custom_call.1} parent=1 // pred_check
      _
    $region51: #{tpu_custom_call.1} parent=1 // pred_check_branch
      %112 = sbr.rel (0) target = $region53
    $region52: #{tpu_custom_call.1} parent=1 // pred_region
      %113 = dma.done [#allocation10], 16
    $region53: #{tpu_custom_call.1} parent=1 // pred_fallthru
      _
    // Predicated region
    $region54: #{tpu_custom_call.1} parent=1 // pred_check
      _
    $region55: #{tpu_custom_call.1} parent=1 // pred_check_branch
      %115 = sbr.rel (0) target = $region57
    $region56: #{tpu_custom_call.1} parent=1 // pred_region
      %116 = dma.done [#allocation13], 128
    $region57: #{tpu_custom_call.1} parent=1 // pred_fallthru
      _
    // Predicated region
    $region58: #{tpu_custom_call.1} parent=1 // pred_check
      _
    $region59: #{tpu_custom_call.1} parent=1 // pred_check_branch
      %118 = sbr.rel (0) target = $region61
    $region60: #{tpu_custom_call.1} parent=1 // pred_region
      %119 = dma.done [#allocation13], 128
    $region61: #{tpu_custom_call.1} parent=1 // pred_fallthru
      _
    %v121 = vld [vmem:[#allocation3] sm:$0xf]
    %v122 = vld [vmem:[#allocation6] sm:$0xf]
    %v123 = vld [vmem:[#allocation6 + $0x4] sm:$0xf]
    %v124 = vld [vmem:[#allocation6 + $0x8] sm:$0xf]
    %v125 = vld [vmem:[#allocation6 + $0xc] sm:$0xf]
    %v126 = vld [vmem:[#allocation6 + $0x10] sm:$0xf]
    %v127 = vld [vmem:[#allocation6 + $0x14] sm:$0xf]
    %v128 = vld [vmem:[#allocation6 + $0x18] sm:$0xf]
    %v129 = vld [vmem:[#allocation6 + $0x1c] sm:$0xf]
    %v130 = vld [vmem:[#allocation6 + $0x20] sm:$0xf]
    %v131 = vld [vmem:[#allocation6 + $0x24] sm:$0xf]
    %v132 = vld [vmem:[#allocation6 + $0x28] sm:$0xf]
    %v133 = vld [vmem:[#allocation6 + $0x2c] sm:$0xf]
    %v134 = vld [vmem:[#allocation6 + $0x30] sm:$0xf]
    %v135 = vld [vmem:[#allocation6 + $0x34] sm:$0xf]
    %v136 = vld [vmem:[#allocation6 + $0x38] sm:$0xf]
    %v137 = vld [vmem:[#allocation6 + $0x3c] sm:$0xf]
    %v138 = vld [vmem:[#allocation8] sm:$0x1]
    %v140 = vlaneseq
    %v141 = vshrl.u32 %v140, 7
    %v142 = vsub.s32 0, %v141
    %v143 = vrot.slane %v138, %v142
    %v161 = vunpack.c.l.b16 %v122
    %v162 = vunpack.c.l.b16 %v123
    %v163 = vunpack.c.l.b16 %v124
    %v164 = vunpack.c.l.b16 %v125
    %v165 = vunpack.c.l.b16 %v126
    %v166 = vunpack.c.l.b16 %v127
    %v167 = vunpack.c.l.b16 %v128
    %v168 = vunpack.c.l.b16 %v129
    %v169 = vunpack.c.l.b16 %v130
    %v170 = vunpack.c.l.b16 %v131
    %v171 = vunpack.c.l.b16 %v132
    %v172 = vunpack.c.l.b16 %v133
    %v173 = vunpack.c.l.b16 %v134
    %v174 = vunpack.c.l.b16 %v135
    %v175 = vunpack.c.l.b16 %v136
    %v176 = vunpack.c.l.b16 %v137
    %v177 = vpack.c.b16 %v162, %v161
    %v178 = vpack.c.b16 %v164, %v163
    %v179 = vpack.c.b16 %v166, %v165
    %v180 = vpack.c.b16 %v168, %v167
    %v181 = vpack.c.b16 %v170, %v169
    %v182 = vpack.c.b16 %v172, %v171
    %v183 = vpack.c.b16 %v174, %v173
    %v184 = vpack.c.b16 %v176, %v175
    %193 = vmatprep.subr.bf16.mxu0 0
    %194 = vmatpush1.bf16.msra.mxu0 %v177
    %195 = vmatprep.subr.bf16.mxu0 0
    %196 = vmatpush1.bf16.msra.mxu0 %v178
    %197 = vmatprep.subr.bf16.mxu0 0
    %198 = vmatpush1.bf16.msra.mxu0 %v179
    %199 = vmatprep.subr.bf16.mxu0 0
    %200 = vmatpush1.bf16.msra.mxu0 %v180
    %201 = vmatprep.subr.bf16.mxu0 0
    %202 = vmatpush1.bf16.msra.mxu0 %v181
    %203 = vmatprep.subr.bf16.mxu0 0
    %204 = vmatpush1.bf16.msra.mxu0 %v182
    %205 = vmatprep.subr.bf16.mxu0 0
    %206 = vmatpush1.bf16.msra.mxu0 %v183
    %207 = vmatprep.subr.bf16.mxu0 0
    %208 = vmatpush1.bf16.msra.mxu0 %v184
    %209 = vmatprep.subr.bf16.mxu0 0
    %210 = vmatpush1.bf16.msra.mxu0 0
    %211 = vmatprep.subr.bf16.mxu0 0
    %212 = vmatpush1.bf16.msra.mxu0 0
    %213 = vmatprep.subr.bf16.mxu0 0
    %214 = vmatpush1.bf16.msra.mxu0 0
    %215 = vmatprep.subr.bf16.mxu0 0
    %216 = vmatpush1.bf16.msra.mxu0 0
    %217 = vmatprep.subr.bf16.mxu0 0
    %218 = vmatpush1.bf16.msra.mxu0 0
    %219 = vmatprep.subr.bf16.mxu0 0
    %220 = vmatpush1.bf16.msra.mxu0 0
    %221 = vmatprep.subr.bf16.mxu0 0
    %222 = vmatpush1.bf16.msra.mxu0 0
    %223 = vmatprep.subr.bf16.mxu0 0
    %224 = vmatpush1.bf16.msra.mxu0 0
    %225 = vmatprep.mubr.bf16.mxu0 0
    %226 = vmatmul.mubr.bf16.gmra.mrb[0].mxu0 %v121
    %v227 = vpop.f32.mrb[0].mxu0
    %v228 = vadd.f32 %v143, %v227
    %v229 = vpop.f32.mrb[0].mxu0
    %v230 = vpop.f32.mrb[0].mxu0
    %v231 = vpop.f32.mrb[0].mxu0
    %232 = vdwg.mxu0
    %v233 = vpack.c.bf16 %v228, %v228
    %v234 = vld [vmem:[#allocation9] sm:$0xf]
    %v235 = vld [vmem:[#allocation9 + $0x4] sm:$0xf]
    %v236 = vld [vmem:[#allocation9 + $0x8] sm:$0xf]
    %v237 = vld [vmem:[#allocation9 + $0xc] sm:$0xf]
    %v238 = vld [vmem:[#allocation9 + $0x10] sm:$0xf]
    %v239 = vld [vmem:[#allocation9 + $0x14] sm:$0xf]
    %v240 = vld [vmem:[#allocation9 + $0x18] sm:$0xf]
    %v241 = vld [vmem:[#allocation9 + $0x1c] sm:$0xf]
    %v242 = vld [vmem:[#allocation9 + $0x20] sm:$0xf]
    %v243 = vld [vmem:[#allocation9 + $0x24] sm:$0xf]
    %v244 = vld [vmem:[#allocation9 + $0x28] sm:$0xf]
    %v245 = vld [vmem:[#allocation9 + $0x2c] sm:$0xf]
    %v246 = vld [vmem:[#allocation9 + $0x30] sm:$0xf]
    %v247 = vld [vmem:[#allocation9 + $0x34] sm:$0xf]
    %v248 = vld [vmem:[#allocation9 + $0x38] sm:$0xf]
    %v249 = vld [vmem:[#allocation9 + $0x3c] sm:$0xf]
    %v250 = vld [vmem:[#allocation11] sm:$0x1]
    %v252 = vlaneseq
    %v253 = vshrl.u32 %v252, 7
    %v254 = vsub.s32 0, %v253
    %v255 = vrot.slane %v250, %v254
    %v273 = vunpack.c.l.b16 %v234
    %v274 = vunpack.c.l.b16 %v235
    %v275 = vunpack.c.l.b16 %v236
    %v276 = vunpack.c.l.b16 %v237
    %v277 = vunpack.c.l.b16 %v238
    %v278 = vunpack.c.l.b16 %v239
    %v279 = vunpack.c.l.b16 %v240
    %v280 = vunpack.c.l.b16 %v241
    %v281 = vunpack.c.l.b16 %v242
    %v282 = vunpack.c.l.b16 %v243
    %v283 = vunpack.c.l.b16 %v244
    %v284 = vunpack.c.l.b16 %v245
    %v285 = vunpack.c.l.b16 %v246
    %v286 = vunpack.c.l.b16 %v247
    %v287 = vunpack.c.l.b16 %v248
    %v288 = vunpack.c.l.b16 %v249
    %v289 = vpack.c.b16 %v274, %v273
    %v290 = vpack.c.b16 %v276, %v275
    %v291 = vpack.c.b16 %v278, %v277
    %v292 = vpack.c.b16 %v280, %v279
    %v293 = vpack.c.b16 %v282, %v281
    %v294 = vpack.c.b16 %v284, %v283
    %v295 = vpack.c.b16 %v286, %v285
    %v296 = vpack.c.b16 %v288, %v287
    %305 = vmatprep.subr.bf16.mxu0 0
    %306 = vmatpush1.bf16.msra.mxu0 %v289
    %307 = vmatprep.subr.bf16.mxu0 0
    %308 = vmatpush1.bf16.msra.mxu0 %v290
    %309 = vmatprep.subr.bf16.mxu0 0
    %310 = vmatpush1.bf16.msra.mxu0 %v291
    %311 = vmatprep.subr.bf16.mxu0 0
    %312 = vmatpush1.bf16.msra.mxu0 %v292
    %313 = vmatprep.subr.bf16.mxu0 0
    %314 = vmatpush1.bf16.msra.mxu0 %v293
    %315 = vmatprep.subr.bf16.mxu0 0
    %316 = vmatpush1.bf16.msra.mxu0 %v294
    %317 = vmatprep.subr.bf16.mxu0 0
    %318 = vmatpush1.bf16.msra.mxu0 %v295
    %319 = vmatprep.subr.bf16.mxu0 0
    %320 = vmatpush1.bf16.msra.mxu0 %v296
    %321 = vmatprep.subr.bf16.mxu0 0
    %322 = vmatpush1.bf16.msra.mxu0 0
    %323 = vmatprep.subr.bf16.mxu0 0
    %324 = vmatpush1.bf16.msra.mxu0 0
    %325 = vmatprep.subr.bf16.mxu0 0
    %326 = vmatpush1.bf16.msra.mxu0 0
    %327 = vmatprep.subr.bf16.mxu0 0
    %328 = vmatpush1.bf16.msra.mxu0 0
    %329 = vmatprep.subr.bf16.mxu0 0
    %330 = vmatpush1.bf16.msra.mxu0 0
    %331 = vmatprep.subr.bf16.mxu0 0
    %332 = vmatpush1.bf16.msra.mxu0 0
    %333 = vmatprep.subr.bf16.mxu0 0
    %334 = vmatpush1.bf16.msra.mxu0 0
    %335 = vmatprep.subr.bf16.mxu0 0
    %336 = vmatpush1.bf16.msra.mxu0 0
    %337 = vmatprep.mubr.bf16.mxu0 0
    %338 = vmatmul.mubr.bf16.gmra.mrb[0].mxu0 %v233
    %v339 = vpop.f32.mrb[0].mxu0
    %v340 = vadd.f32 %v255, %v339
    %v341 = vpop.f32.mrb[0].mxu0
    %v342 = vpop.f32.mrb[0].mxu0
    %v343 = vpop.f32.mrb[0].mxu0
    %344 = vdwg.mxu0
    %345 = vst [vmem:[#allocation15] sm:$0xff] %v340
    %v346 = vld [vmem:[#allocation12] sm:$0xff]
    %347 = vmax.xlane.f32.xlu0 %v346
    %v348 = vpop.xlane.xlu0 %347
    %v349 = vsub.f32 %v346, %v348
    %v350 = vmul.f32 %v349, 1.442695
    %v351 = vpow.pop %v350
    %352 = vadd.xlane.f32.xlu0 %v351
    %v353 = vpop.xlane.xlu0 %352
    %v354 = vrcp.pop %v353
    %v355 = vmul.f32 %v351, %v354
    %356 = vst [vmem:[#allocation18] sm:$0xff] %v355
    %v357 = vlaneseq
    %v358 = vand.u32 %v357, 127
    %vm359 = vcmp.eq.f32.partialorder %v346, %v348
    %v360 = vsel %vm359, %v358, 128
    %v361 = vand.u32 %v360, 65535
    %v362 = vshra.s32 %v360, 16
    %v363 = vcvt.s32.f32 %v361
    %v364 = vcvt.s32.f32 %v362
    %365 = vmin.xlane.f32.xlu0 %v364
    %v366 = vpop.xlane.xlu0 %365
    %vm367 = vcmp.eq.f32.partialorder %v364, %v366
    %v368 = vsel %vm367, %v363, inf
    %369 = vmin.xlane.f32.xlu0 %v368
    %v370 = vpop.xlane.xlu0 %369
    %v371 = vcvt.f32.s32 %v370
    %v372 = vcvt.f32.s32 %v366
    %v373 = vshll.u32 %v372, 16
    %v374 = vadd.s32 %v373, %v371
    %375 = vmax.xlane.f32.xlu0 %v355
    %v376 = vpop.xlane.xlu0 %375
    %s377 = sld [smem:[#allocation2]]
    %v378 = vstv %s377
    %vm379 = vcmp.eq.s32.totalorder %v374, %v378
    %vm380 = vcmp.gt.f32.partialorder %v376, 0.5
    %vm381 = vmand %vm379, %vm380
    %v382 = vsel %vm381, 1, 0
    %v383 = vcvt.s32.f32 %v382
    %v384 = vld [vmem:[#allocation14] sm:$0xff]
    %v385 = vmul.f32 %v384, %v383
    %vm386 = vcmp.eq.s32.totalorder %v358, 4
    %v387 = vsel %vm386, %v383, %v385
    %388 = vst [vmem:[#allocation16] sm:$0xff] %v387
    // Predicated region
    $region62: #{tpu_custom_call.1} parent=1 // pred_check
      _
    $region63: #{tpu_custom_call.1} parent=1 // pred_check_branch
      %390 = sbr.rel (0) target = $region65
    $region64: #{tpu_custom_call.1} parent=1 // pred_region
      %s392 = ssub.s32 128, 128
      %393 = vsyncadd [#allocation5], %s392
      %s395 = sshll.u32 [#allocation15], 4
      %s396 = int_to_ptr.vmem [resolvable:$true] %s395
      %398 = dma.vmem_to_hbm [thread:$0]  %s396, 128, %s8, [#allocation5]
    $region65: #{tpu_custom_call.1} parent=1 // pred_fallthru
      _
    // Predicated region
    $region66: #{tpu_custom_call.1} parent=1 // pred_check
      _
    $region67: #{tpu_custom_call.1} parent=1 // pred_check_branch
      %400 = sbr.rel (0) target = $region69
    $region68: #{tpu_custom_call.1} parent=1 // pred_region
      %s402 = ssub.s32 128, 128
      %403 = vsyncadd [#allocation17], %s402
      %s405 = sshll.u32 [#allocation16], 4
      %s406 = int_to_ptr.vmem [resolvable:$true] %s405
      %408 = dma.vmem_to_hbm [thread:$0]  %s406, 128, %s9, [#allocation17]
    $region69: #{tpu_custom_call.1} parent=1 // pred_fallthru
      _
    // Predicated region
    $region70: #{tpu_custom_call.1} parent=1 // pred_check
      _
    $region71: #{tpu_custom_call.1} parent=1 // pred_check_branch
      %410 = sbr.rel (0) target = $region73
    $region72: #{tpu_custom_call.1} parent=1 // pred_region
      %s412 = ssub.s32 128, 128
      %413 = vsyncadd [#allocation17], %s412
      %s415 = sshll.u32 [#allocation18], 4
      %s416 = int_to_ptr.vmem [resolvable:$true] %s415
      %418 = dma.vmem_to_hbm [thread:$0]  %s416, 128, %s10, [#allocation17]
    $region73: #{tpu_custom_call.1} parent=1 // pred_fallthru
      _
    // Predicated region
    $region74: #{tpu_custom_call.1} parent=1 // pred_check
      _
    $region75: #{tpu_custom_call.1} parent=1 // pred_check_branch
      %420 = sbr.rel (0) target = $region77
    $region76: #{tpu_custom_call.1} parent=1 // pred_region
      %421 = dma.done [#allocation5], 128
    $region77: #{tpu_custom_call.1} parent=1 // pred_fallthru
      _
    // Predicated region
    $region78: #{tpu_custom_call.1} parent=1 // pred_check
      _
    $region79: #{tpu_custom_call.1} parent=1 // pred_check_branch
      %423 = sbr.rel (0) target = $region81
    $region80: #{tpu_custom_call.1} parent=1 // pred_region
      %424 = dma.done [#allocation17], 128
    $region81: #{tpu_custom_call.1} parent=1 // pred_fallthru
      _
    // Predicated region
    $region82: #{tpu_custom_call.1} parent=1 // pred_check
      _
    $region83: #{tpu_custom_call.1} parent=1 // pred_check_branch
      %426 = sbr.rel (0) target = $region85
    $region84: #{tpu_custom_call.1} parent=1 // pred_region
      %427 = dma.done [#allocation17], 128
    $region85: #{tpu_custom_call.1} parent=1 // pred_fallthru
      _
    %428 = vsyncpa [#allocation4], 1
    %429 = vsyncpa [#allocation7], 1
    %430 = vsyncpa [#allocation10], 1
    %431 = vsyncpa [#allocation13], 1
    %432 = vsyncpa [#allocation5], 1
    %433 = vsyncpa [#allocation17], 1

</llo_original>
